<compile_context>
chip_gen: v5e
topology: v5e:2x2
jax: 0.10.0
libtpu: 0.0.40
codegen_flags: <defaults>
</compile_context>

<pallas_src>
import jax
import jax.numpy as jnp
from jax.experimental import pallas as pl
from jax.experimental.pallas import tpu as pltpu

IN_F = 100   # linear1 in_features
HID_F = 50   # linear1 out_features / linear2 in_features
OUT_F = 10   # linear2 out_features


def _round_up(n, m):
    return ((n + m - 1) // m) * m


def mlp_kernel(x_ref, w1_ref, b1_ref, w2_ref, b2_ref, o_ref):
    # Layer 1: f32 MXU matmul (f32 accumulation), bias + ReLU on the VPU in f32.
    h = jnp.dot(x_ref[...], w1_ref[...], preferred_element_type=jnp.float32)
    h = jnp.maximum(h + b1_ref[...], 0.0)
    # Layer 2: f32 MXU matmul + bias; write the logical 10-wide output directly.
    out = jnp.dot(h, w2_ref[...], preferred_element_type=jnp.float32)
    o_ref[...] = (out + b2_ref[...]).astype(o_ref.dtype)


def simple_model_forward(x, w1, b1, w2, b2, *, tb=1024):
    """x: (B, 100) f32; w1: (100, 50); b1: (50,); w2: (50, 10); b2: (10,).

    Weights are stored pre-transposed as (in_features, out_features) so the kernel
    computes plain x @ W (+ b), matching nn.Linear's y = x W^T + b.
    """
    B = x.shape[0]

    # Batch tile: multiple of 8 (f32 sublane packing). Cap at ~B/2 so large
    # batches always get >= 2 "parallel" grid steps (v7x has 2 TensorCores);
    # also never larger than the (sublane-rounded) batch itself.
    tb = max(8, min(_round_up(tb, 8),
                    _round_up(pl.cdiv(B, 2), 8),
                    _round_up(B, 8)))
    grid = (pl.cdiv(B, tb),)

    # Biases as (1, N) rows so they broadcast against (tb, N) tiles.
    b1_2d = b1.reshape(1, HID_F).astype(jnp.float32)
    b2_2d = b2.reshape(1, OUT_F).astype(jnp.float32)

    cost = pl.CostEstimate(
        flops=2 * B * (IN_F * HID_F + HID_F * OUT_F),
        transcendentals=0,
        bytes_accessed=4 * (B * IN_F + B * OUT_F
                            + IN_F * HID_F + HID_F
                            + HID_F * OUT_F + OUT_F),
    )

    return pl.pallas_call(
        mlp_kernel,
        out_shape=jax.ShapeDtypeStruct((B, OUT_F), jnp.float32),
        grid=grid,
        in_specs=[
            pl.BlockSpec((tb, IN_F), lambda i: (i, 0)),     # x: tiled over batch
            pl.BlockSpec((IN_F, HID_F), lambda i: (0, 0)),  # W1: resident
            pl.BlockSpec((1, HID_F), lambda i: (0, 0)),     # b1: resident
            pl.BlockSpec((HID_F, OUT_F), lambda i: (0, 0)), # W2: resident
            pl.BlockSpec((1, OUT_F), lambda i: (0, 0)),     # b2: resident
        ],
        out_specs=pl.BlockSpec((tb, OUT_F), lambda i: (i, 0)),
        compiler_params=pltpu.CompilerParams(
            dimension_semantics=("parallel",),
        ),
        cost_estimate=cost,
    )(x.astype(jnp.float32), w1.astype(jnp.float32), b1_2d,
      w2.astype(jnp.float32), b2_2d)


def init_params(key):
    """Deterministic init matching nn.Linear shapes (weights kept transposed)."""
    k1, k2, k3, k4 = jax.random.split(key, 4)
    # nn.Linear default: U(-1/sqrt(fan_in), 1/sqrt(fan_in))
    lim1 = 1.0 / (IN_F ** 0.5)
    lim2 = 1.0 / (HID_F ** 0.5)
    w1 = jax.random.uniform(k1, (IN_F, HID_F), jnp.float32, -lim1, lim1)
    b1 = jax.random.uniform(k2, (HID_F,), jnp.float32, -lim1, lim1)
    w2 = jax.random.uniform(k3, (HID_F, OUT_F), jnp.float32, -lim2, lim2)
    b2 = jax.random.uniform(k4, (OUT_F,), jnp.float32, -lim2, lim2)
    return w1, b1, w2, b2


if __name__ == "__main__":
    key = jax.random.PRNGKey(0)
    kx, kp = jax.random.split(key)
    B = 8
    x = jax.random.normal(kx, (B, IN_F), jnp.float32)
    w1, b1, w2, b2 = init_params(kp)

    out = simple_model_forward(x, w1, b1, w2, b2)
    out = jax.block_until_ready(out)
    assert out.shape == (B, OUT_F)

    # Pure f32 reference of the PyTorch forward: relu(x @ W1 + b1) @ W2 + b2.
    ref = jnp.maximum(x @ w1 + b1, 0.0) @ w2 + b2
    assert jnp.allclose(out, ref, atol=2e-2, rtol=2e-2), "mismatch vs f32 reference"

    print("KERNEL_OK")
</pallas_src>

<mosaic_0001>
module attributes {stable_mosaic.version = 11 : i64} {
  func.func @mlp_kernel(%arg0: i32, %arg1: memref<8x100xf32, #tpu.memory_space<vmem>>, %arg2: memref<100x50xf32, #tpu.memory_space<vmem>>, %arg3: memref<1x50xf32, #tpu.memory_space<vmem>>, %arg4: memref<50x10xf32, #tpu.memory_space<vmem>>, %arg5: memref<1x10xf32, #tpu.memory_space<vmem>>, %arg6: memref<8x10xf32, #tpu.memory_space<vmem>>) attributes {dimension_semantics = [#tpu.dimension_semantics<parallel>], iteration_bounds = array<i64: 1>, scalar_prefetch = 0 : i64, scratch_operands = 0 : i64, tpu.core_type = #tpu.core_type<tc>, window_params = [{transform_indices = @transform_0, window_bounds = array<i64: 8, 100>}, {pipeline_mode = #tpu.pipeline_mode<synchronous>, transform_indices = @transform_1, window_bounds = array<i64: 100, 50>}, {pipeline_mode = #tpu.pipeline_mode<synchronous>, transform_indices = @transform_2, window_bounds = array<i64: 1, 50>}, {pipeline_mode = #tpu.pipeline_mode<synchronous>, transform_indices = @transform_3, window_bounds = array<i64: 50, 10>}, {pipeline_mode = #tpu.pipeline_mode<synchronous>, transform_indices = @transform_4, window_bounds = array<i64: 1, 10>}, {transform_indices = @transform_5, window_bounds = array<i64: 8, 10>}]} {
    %c0 = arith.constant 0 : index
    %c0_0 = arith.constant 0 : index
    %0 = vector.load %arg1[%c0, %c0_0] : memref<8x100xf32, #tpu.memory_space<vmem>>, vector<8x100xf32>
    %c0_1 = arith.constant 0 : index
    %c0_2 = arith.constant 0 : index
    %1 = vector.load %arg2[%c0_1, %c0_2] : memref<100x50xf32, #tpu.memory_space<vmem>>, vector<100x50xf32>
    %cst = arith.constant dense<0.000000e+00> : vector<8x50xf32>
    %2 = tpu.matmul %0, %1, %cst {dimension_numbers = #tpu.dot_dimension_numbers<[1], [0], [0], [1], [0, 0, 1, 1], [], []>} : vector<8x100xf32>, vector<100x50xf32>, vector<8x50xf32> -> vector<8x50xf32>
    %c0_3 = arith.constant 0 : index
    %c0_4 = arith.constant 0 : index
    %3 = vector.load %arg3[%c0_3, %c0_4] : memref<1x50xf32, #tpu.memory_space<vmem>>, vector<1x50xf32>
    %4 = vector.broadcast %3 : vector<1x50xf32> to vector<8x50xf32>
    %5 = arith.addf %2, %4 : vector<8x50xf32>
    %cst_5 = arith.constant 0.000000e+00 : f32
    %6 = vector.broadcast %cst_5 : f32 to vector<8x50xf32>
    %7 = arith.maximumf %5, %6 : vector<8x50xf32>
    %c0_6 = arith.constant 0 : index
    %c0_7 = arith.constant 0 : index
    %8 = vector.load %arg4[%c0_6, %c0_7] : memref<50x10xf32, #tpu.memory_space<vmem>>, vector<50x10xf32>
    %cst_8 = arith.constant dense<0.000000e+00> : vector<8x10xf32>
    %9 = tpu.matmul %7, %8, %cst_8 {dimension_numbers = #tpu.dot_dimension_numbers<[1], [0], [0], [1], [0, 0, 1, 1], [], []>} : vector<8x50xf32>, vector<50x10xf32>, vector<8x10xf32> -> vector<8x10xf32>
    %c0_9 = arith.constant 0 : index
    %c0_10 = arith.constant 0 : index
    %10 = vector.load %arg5[%c0_9, %c0_10] : memref<1x10xf32, #tpu.memory_space<vmem>>, vector<1x10xf32>
    %11 = vector.broadcast %10 : vector<1x10xf32> to vector<8x10xf32>
    %12 = arith.addf %9, %11 : vector<8x10xf32>
    %c0_11 = arith.constant 0 : index
    %c0_12 = arith.constant 0 : index
    %13 = vector.load %arg6[%c0_11, %c0_12] : memref<8x10xf32, #tpu.memory_space<vmem>>, vector<8x10xf32>
    tpu.vector_store %arg6[%c0_11, %c0_12], %12 {strides = array<i32>} : memref<8x10xf32, #tpu.memory_space<vmem>>, vector<8x10xf32>,
    return
  }
  func.func @transform_0(%arg0: i32) -> (i32, i32) {
    %c0_i32 = arith.constant 0 : i32
    %c0_i32_0 = arith.constant 0 : i32
    return %arg0, %c0_i32 : i32, i32
  }
  func.func @transform_1(%arg0: i32) -> (i32, i32) {
    %c0_i32 = arith.constant 0 : i32
    %c0_i32_0 = arith.constant 0 : i32
    %c0_i32_1 = arith.constant 0 : i32
    return %c0_i32, %c0_i32_0 : i32, i32
  }
  func.func @transform_2(%arg0: i32) -> (i32, i32) {
    %c0_i32 = arith.constant 0 : i32
    %c0_i32_0 = arith.constant 0 : i32
    %c0_i32_1 = arith.constant 0 : i32
    return %c0_i32, %c0_i32_0 : i32, i32
  }
  func.func @transform_3(%arg0: i32) -> (i32, i32) {
    %c0_i32 = arith.constant 0 : i32
    %c0_i32_0 = arith.constant 0 : i32
    %c0_i32_1 = arith.constant 0 : i32
    return %c0_i32, %c0_i32_0 : i32, i32
  }
  func.func @transform_4(%arg0: i32) -> (i32, i32) {
    %c0_i32 = arith.constant 0 : i32
    %c0_i32_0 = arith.constant 0 : i32
    %c0_i32_1 = arith.constant 0 : i32
    return %c0_i32, %c0_i32_0 : i32, i32
  }
  func.func @transform_5(%arg0: i32) -> (i32, i32) {
    %c0_i32 = arith.constant 0 : i32
    %c0_i32_0 = arith.constant 0 : i32
    return %arg0, %c0_i32 : i32, i32
  }
}

</mosaic_0001>

<llo_original>
// kernel: tpu_custom_call.1
$region0: #{tpu_custom_call.1}
  #allocation0 [shape = 'u32[]', space=smem, size = 0x4, offset = 0x4, fixed_abs, tag = 'smem constant byte address 0x4 - core index']
  #allocation1 [shape = 'u32[72,128]{1,0:T(1,128)}', space=vmem, size = 0x9000, scoped, tag = 'internal scratch']
  %s0 = inlined_call_operand.vmem [shape: f32[8,100], index: 0, kind: input, shape index: {}]
  %s1 = inlined_call_operand.vmem [shape: f32[100,50], index: 1, kind: input, shape index: {}]
  %s2 = inlined_call_operand.vmem [shape: f32[1,50], index: 2, kind: input, shape index: {}]
  %s3 = inlined_call_operand.vmem [shape: f32[50,10], index: 3, kind: input, shape index: {}]
  %s4 = inlined_call_operand.vmem [shape: f32[1,10], index: 4, kind: input, shape index: {}]
  %s5 = inlined_call_operand.hbm [shape: f32[8,10], index: 5, kind: output, shape index: {}]
  %s6 = sld [smem:[#allocation0]]
  $region30: #{tpu_custom_call.1} parent=0
    _
  %s8 = ssub.s32 1, %s6
  %s9 = scalar_select 0, %s8, %s6
  $region1: #{tpu_custom_call.1} parent=0
    #allocation2 [shape = 'u8[4096]{0}', space=vmem, size = 0x1000, scoped, tag = 'output window, operand 0, single buffered']
    #allocation3 [shape = 's32[1]{0}', space=sflag, size = 0x4, scoped, tag = 'scoped memory for tpu_custom_call.1']
    %10 = vsyncpa [#allocation3], 0
    // Predicated region
    $region2: #{tpu_custom_call.1} parent=1 // pred_check
      _
    $region3: #{tpu_custom_call.1} parent=1 // pred_check_branch
      %12 = sbr.rel (0) target = $region5
    $region4: #{tpu_custom_call.1} parent=1 // pred_region
      _
    $region5: #{tpu_custom_call.1} parent=1 // pred_fallthru
      _
    // Predicated region
    $region6: #{tpu_custom_call.1} parent=1 // pred_check
      _
    $region7: #{tpu_custom_call.1} parent=1 // pred_check_branch
      %14 = sbr.rel (0) target = $region9
    $region8: #{tpu_custom_call.1} parent=1 // pred_region
      _
    $region9: #{tpu_custom_call.1} parent=1 // pred_fallthru
      _
    // Predicated region
    $region10: #{tpu_custom_call.1} parent=1 // pred_check
      _
    $region11: #{tpu_custom_call.1} parent=1 // pred_check_branch
      %16 = sbr.rel (0) target = $region13
    $region12: #{tpu_custom_call.1} parent=1 // pred_region
      _
    $region13: #{tpu_custom_call.1} parent=1 // pred_fallthru
      _
    // Predicated region
    $region14: #{tpu_custom_call.1} parent=1 // pred_check
      _
    $region15: #{tpu_custom_call.1} parent=1 // pred_check_branch
      %18 = sbr.rel (0) target = $region17
    $region16: #{tpu_custom_call.1} parent=1 // pred_region
      _
    $region17: #{tpu_custom_call.1} parent=1 // pred_fallthru
      _
    // Predicated region
    $region18: #{tpu_custom_call.1} parent=1 // pred_check
      _
    $region19: #{tpu_custom_call.1} parent=1 // pred_check_branch
      %20 = sbr.rel (0) target = $region21
    $region20: #{tpu_custom_call.1} parent=1 // pred_region
      _
    $region21: #{tpu_custom_call.1} parent=1 // pred_fallthru
      _
    %v21 = vld [vmem:[%s0] sm:$0xff]
    %v22 = vld [vmem:[%s1] sm:$0xff]
    %v23 = vld [vmem:[%s1 + $0x8] sm:$0xff]
    %v24 = vld [vmem:[%s1 + $0x10] sm:$0xff]
    %v25 = vld [vmem:[%s1 + $0x18] sm:$0xff]
    %v26 = vld [vmem:[%s1 + $0x20] sm:$0xff]
    %v27 = vld [vmem:[%s1 + $0x28] sm:$0xff]
    %v28 = vld [vmem:[%s1 + $0x30] sm:$0xff]
    %v29 = vld [vmem:[%s1 + $0x38] sm:$0xff]
    %v30 = vld [vmem:[%s1 + $0x40] sm:$0xff]
    %v31 = vld [vmem:[%s1 + $0x48] sm:$0xff]
    %v32 = vld [vmem:[%s1 + $0x50] sm:$0xff]
    %v33 = vld [vmem:[%s1 + $0x58] sm:$0xff]
    %v34 = vld [vmem:[%s1 + $0x60] sm:$0xf]
    %v35 = vld [vmem:[%s2] sm:$0x1]
    %v37 = vperm.slane %v35, 0
    %vm39 = vcmask 818176
    %v41 = vsel %vm39, %v21, 0
    %vm43 = vcmask 1043456
    %v45 = vsel %vm43, %v34, 0
    %47 = vmatpush.msra.mxu0 0.0
    %48 = vmatpush.msra.mxu0 0.0
    %49 = vmatpush.msra.mxu0 0.0
    %50 = vmatpush.msra.mxu0 %v45
    %51 = vmatpush.msra.mxu0 %v33
    %52 = vmatpush.msra.mxu0 %v32
    %53 = vmatpush.msra.mxu0 %v31
    %54 = vmatpush.msra.mxu0 %v30
    %55 = vmatpush.msra.mxu0 %v29
    %56 = vmatpush.msra.mxu0 %v28
    %57 = vmatpush.msra.mxu0 %v27
    %58 = vmatpush.msra.mxu0 %v26
    %59 = vmatpush.msra.mxu0 %v25
    %60 = vmatpush.msra.mxu0 %v24
    %61 = vmatpush.msra.mxu0 %v23
    %62 = vmatpush.msra.mxu0 %v22
    %63 = vmatmul.f32.gmra.mxu0 %v41
    %v64 = vpop.f32.mrf.mxu0
    %v65 = vadd.f32 %v37, %v64
    %66 = vdwg.mxu0
    %v67 = vmax.f32 %v65, 0.0
    %v68 = vld [vmem:[%s3] sm:$0xff]
    %v69 = vld [vmem:[%s3 + $0x8] sm:$0xff]
    %v70 = vld [vmem:[%s3 + $0x10] sm:$0xff]
    %v71 = vld [vmem:[%s3 + $0x18] sm:$0xff]
    %v72 = vld [vmem:[%s3 + $0x20] sm:$0xff]
    %v73 = vld [vmem:[%s3 + $0x28] sm:$0xff]
    %v74 = vld [vmem:[%s3 + $0x30] sm:$0x3]
    %v75 = vld [vmem:[%s4] sm:$0x1]
    %v77 = vperm.slane %v75, 0
    %vm79 = vcmask 408576
    %v81 = vsel %vm79, %v67, 0
    %vm83 = vcmask 1041408
    %v85 = vsel %vm83, %v74, 0
    %87 = vmatpush.msra.mxu0 0.0
    %88 = vmatpush.msra.mxu0 0.0
    %89 = vmatpush.msra.mxu0 0.0
    %90 = vmatpush.msra.mxu0 0.0
    %91 = vmatpush.msra.mxu0 0.0
    %92 = vmatpush.msra.mxu0 0.0
    %93 = vmatpush.msra.mxu0 0.0
    %94 = vmatpush.msra.mxu0 0.0
    %95 = vmatpush.msra.mxu0 0.0
    %96 = vmatpush.msra.mxu0 %v85
    %97 = vmatpush.msra.mxu0 %v73
    %98 = vmatpush.msra.mxu0 %v72
    %99 = vmatpush.msra.mxu0 %v71
    %100 = vmatpush.msra.mxu0 %v70
    %101 = vmatpush.msra.mxu0 %v69
    %102 = vmatpush.msra.mxu0 %v68
    %103 = vmatmul.f32.gmra.mxu0 %v81
    %v104 = vpop.f32.mrf.mxu0
    %v105 = vadd.f32 %v77, %v104
    %106 = vdwg.mxu0
    %vm107 = vcmask 80896
    %108 = vst.msk [vmem:[#allocation2] sm:$0xff] %vm107, %v105
    // Predicated region
    $region22: #{tpu_custom_call.1} parent=1 // pred_check
      _
    $region23: #{tpu_custom_call.1} parent=1 // pred_check_branch
      %110 = sbr.rel (0) target = $region25
    $region24: #{tpu_custom_call.1} parent=1 // pred_region
      %112 = vsyncadd [#allocation3], 0
      %s114 = sshll.u32 [#allocation2], 4
      %s115 = int_to_ptr.vmem [resolvable:$true] %s114
      %s116 = sshll.u32 %s5, 4
      %s117 = int_to_ptr.hbm [resolvable:$true] %s116
      %119 = dma.vmem_to_hbm [thread:$0]  %s115, 128, %s117, [#allocation3]
    $region25: #{tpu_custom_call.1} parent=1 // pred_fallthru
      _
    // Predicated region
    $region26: #{tpu_custom_call.1} parent=1 // pred_check
      _
    $region27: #{tpu_custom_call.1} parent=1 // pred_check_branch
      %121 = sbr.rel (0) target = $region29
    $region28: #{tpu_custom_call.1} parent=1 // pred_region
      %123 = dma.done [#allocation3], 128
    $region29: #{tpu_custom_call.1} parent=1 // pred_fallthru
      _
    %124 = vsyncpa [#allocation3], 1

</llo_original>
